<compile_context>
chip_gen: v6e
topology: v6e:2x2x1
jax: 0.10.0
libtpu: 0.0.40
codegen_flags: <defaults>
</compile_context>

<pallas_src>
import jax
import jax.numpy as jnp
from jax.experimental import pallas as pl
from jax.experimental.pallas import tpu as pltpu

_SUBLANE = 8
_SMALL_B = 512  # grid-less single-tile path threshold


def _round_up(n, m):
    return ((n + m - 1) // m) * m


def _linear_kernel(x_ref, w_ref, b_ref, o_ref):
    # (tb, F) @ (F, O) on the MXU with f32 accumulation, + bias broadcast.
    acc = jnp.dot(x_ref[...], w_ref[...], preferred_element_type=jnp.float32)
    o_ref[...] = (acc + b_ref[...]).astype(o_ref.dtype)


def linear_pallas(x, w_t, b_row, *, block_b=4096):
    """y = x @ w_t + b_row.

    x:     [B, F]  float32
    w_t:   [F, O]  float32 (pre-transposed nn.Linear weight)
    b_row: [1, O]  float32
    returns [B, O] float32
    """
    B, F = x.shape
    O = w_t.shape[1]

    cost = pl.CostEstimate(
        flops=2 * B * F * O,
        transcendentals=0,
        bytes_accessed=4 * (B * F + F * O + O + B * O),
    )

    if B <= _SMALL_B:
        # Grid-less call: whole arrays resident in VMEM.
        return pl.pallas_call(
            _linear_kernel,
            out_shape=jax.ShapeDtypeStruct((B, O), x.dtype),
            in_specs=[
                pl.BlockSpec(memory_space=pltpu.MemorySpace.VMEM),
                pl.BlockSpec(memory_space=pltpu.MemorySpace.VMEM),
                pl.BlockSpec(memory_space=pltpu.MemorySpace.VMEM),
            ],
            out_specs=pl.BlockSpec(memory_space=pltpu.MemorySpace.VMEM),
            cost_estimate=cost,
        )(x, w_t, b_row)

    # Batch-tiled path: big tiles, but always >= 2 grid steps so the
    # "parallel" axis splits across v7x's two TensorCores. No padding:
    # Pallas handles the ragged last block (pads reads, masks OOB writes).
    tb = min(block_b, _round_up(pl.cdiv(B, 2), _SUBLANE))
    nb = pl.cdiv(B, tb)
    return pl.pallas_call(
        _linear_kernel,
        out_shape=jax.ShapeDtypeStruct((B, O), x.dtype),
        grid=(nb,),
        in_specs=[
            pl.BlockSpec((tb, F), lambda i: (i, 0)),
            # Constant block index: weight/bias DMA'd once, VMEM-resident.
            pl.BlockSpec((F, O), lambda i: (0, 0)),
            pl.BlockSpec((1, O), lambda i: (0, 0)),
        ],
        out_specs=pl.BlockSpec((tb, O), lambda i: (i, 0)),
        compiler_params=pltpu.CompilerParams(
            dimension_semantics=("parallel",),  # v7x: split grid over 2 TCs
        ),
        cost_estimate=cost,
    )(x, w_t, b_row)


class PallasLinearModel:
    """JAX/Pallas port of the PyTorch Model (fc = nn.Linear(input_dims*2, 2))."""

    def __init__(self, input_dims, key, dtype=jnp.float32):
        self.input_dims = input_dims
        in_f = input_dims * 2
        out_f = 2
        kw, kb = jax.random.split(key)
        # Deterministic params (mimics nn.Linear's uniform(+-1/sqrt(fan_in))).
        bound = 1.0 / jnp.sqrt(jnp.float32(in_f))
        self.weight = jax.random.uniform(
            kw, (out_f, in_f), dtype, minval=-bound, maxval=bound)  # [O, F]
        self.bias = jax.random.uniform(
            kb, (out_f,), dtype, minval=-bound, maxval=bound)       # [O]
        # One-time param prep, hoisted out of the per-call wrapper.
        self.w_t = jnp.asarray(self.weight.T)          # [F, O]
        self.b_row = self.bias.reshape(1, out_f)       # [1, O]

    def __call__(self, x, *, block_b=4096):
        lead = x.shape[:-1]
        F = x.shape[-1]
        y = linear_pallas(x.reshape(-1, F), self.w_t, self.b_row,
                          block_b=block_b)
        return y.reshape(*lead, self.b_row.shape[1])


if __name__ == "__main__":
    input_dims = 16
    in_features = input_dims * 2   # 32
    out_features = 2

    key = jax.random.PRNGKey(0)
    kparams, kx1, kx2, kx3 = jax.random.split(key, 4)
    model = PallasLinearModel(input_dims, kparams)

    # Small batch -> grid-less single-tile path.
    x_small = jax.random.normal(kx1, (8, in_features), jnp.float32)
    y_small = jax.block_until_ready(model(x_small))
    ref_small = x_small @ model.weight.T + model.bias
    assert y_small.shape == (8, out_features)
    assert jnp.allclose(y_small, ref_small, atol=1e-5, rtol=1e-5)

    # Larger batch -> tiled path, 2 parallel grid steps, unpadded output.
    x_big = jax.random.normal(kx2, (1024, in_features), jnp.float32)
    y_big = jax.block_until_ready(model(x_big, block_b=4096))
    ref_big = x_big @ model.weight.T + model.bias
    assert y_big.shape == (1024, out_features)
    assert jnp.allclose(y_big, ref_big, atol=1e-5, rtol=1e-5)

    # Ragged batch (not a multiple of the tile) -> Pallas masks OOB rows.
    x_rag = jax.random.normal(kx3, (1000, in_features), jnp.float32)
    y_rag = jax.block_until_ready(model(x_rag))
    ref_rag = x_rag @ model.weight.T + model.bias
    assert y_rag.shape == (1000, out_features)
    assert jnp.allclose(y_rag, ref_rag, atol=1e-5, rtol=1e-5)

    print("KERNEL_OK")
</pallas_src>

<mosaic_0001>
module attributes {stable_mosaic.version = 11 : i64} {
  func.func @_linear_kernel(%arg0: memref<8x32xf32, #tpu.memory_space<vmem>>, %arg1: memref<32x2xf32, #tpu.memory_space<vmem>>, %arg2: memref<1x2xf32, #tpu.memory_space<vmem>>, %arg3: memref<8x2xf32, #tpu.memory_space<vmem>>) attributes {dimension_semantics = [], scalar_prefetch = 0 : i64, scratch_operands = 0 : i64, tpu.core_type = #tpu.core_type<tc>} {
    %c0 = arith.constant 0 : index
    %c0_0 = arith.constant 0 : index
    %0 = vector.load %arg0[%c0, %c0_0] : memref<8x32xf32, #tpu.memory_space<vmem>>, vector<8x32xf32>
    %c0_1 = arith.constant 0 : index
    %c0_2 = arith.constant 0 : index
    %1 = vector.load %arg1[%c0_1, %c0_2] : memref<32x2xf32, #tpu.memory_space<vmem>>, vector<32x2xf32>
    %cst = arith.constant dense<0.000000e+00> : vector<8x2xf32>
    %2 = tpu.matmul %0, %1, %cst {dimension_numbers = #tpu.dot_dimension_numbers<[1], [0], [0], [1], [0, 0, 1, 1], [], []>} : vector<8x32xf32>, vector<32x2xf32>, vector<8x2xf32> -> vector<8x2xf32>
    %c0_3 = arith.constant 0 : index
    %c0_4 = arith.constant 0 : index
    %3 = vector.load %arg2[%c0_3, %c0_4] : memref<1x2xf32, #tpu.memory_space<vmem>>, vector<1x2xf32>
    %4 = vector.broadcast %3 : vector<1x2xf32> to vector<8x2xf32>
    %5 = arith.addf %2, %4 : vector<8x2xf32>
    %c0_5 = arith.constant 0 : index
    %c0_6 = arith.constant 0 : index
    %6 = vector.load %arg3[%c0_5, %c0_6] : memref<8x2xf32, #tpu.memory_space<vmem>>, vector<8x2xf32>
    tpu.vector_store %arg3[%c0_5, %c0_6], %5 {strides = array<i32>} : memref<8x2xf32, #tpu.memory_space<vmem>>, vector<8x2xf32>,
    return
  }
}

</mosaic_0001>

<llo_original>
// kernel: tpu_custom_call.1
$region0: #{tpu_custom_call.1}
  #allocation0 [shape = 'u32[]', space=smem, size = 0x4, offset = 0x4, fixed_abs, tag = 'smem constant byte address 0x4 - core index']
  #allocation1 [shape = 'u32[144,128]{1,0:T(1,128)}', space=vmem, size = 0x12000, scoped, tag = 'internal scratch']
  %s0 = inlined_call_operand.vmem [shape: f32[8,32], index: 0, kind: input, shape index: {}]
  %s1 = inlined_call_operand.vmem [shape: f32[32,2], index: 1, kind: input, shape index: {}]
  %s2 = inlined_call_operand.vmem [shape: f32[1,2], index: 2, kind: input, shape index: {}]
  %s3 = inlined_call_operand.vmem [shape: f32[8,2], index: 3, kind: output, shape index: {}]
  %s4 = sld [smem:[#allocation0]]
  $region22: #{tpu_custom_call.1} parent=0
    _
  %s6 = ssub.s32 1, %s4
  %s7 = scalar_select 0, %s6, %s4
  // Predicated region
  $region2: #{tpu_custom_call.1} parent=0 // pred_check
    _
  $region3: #{tpu_custom_call.1} parent=0 // pred_check_branch
    %9 = sbr.rel (0) target = $region5
  $region4: #{tpu_custom_call.1} parent=0 // pred_region
    _
  $region5: #{tpu_custom_call.1} parent=0 // pred_fallthru
    _
  // Predicated region
  $region6: #{tpu_custom_call.1} parent=0 // pred_check
    _
  $region7: #{tpu_custom_call.1} parent=0 // pred_check_branch
    %11 = sbr.rel (0) target = $region9
  $region8: #{tpu_custom_call.1} parent=0 // pred_region
    _
  $region9: #{tpu_custom_call.1} parent=0 // pred_fallthru
    _
  // Predicated region
  $region10: #{tpu_custom_call.1} parent=0 // pred_check
    _
  $region11: #{tpu_custom_call.1} parent=0 // pred_check_branch
    %13 = sbr.rel (0) target = $region13
  $region12: #{tpu_custom_call.1} parent=0 // pred_region
    _
  $region13: #{tpu_custom_call.1} parent=0 // pred_fallthru
    _
  %v14 = vld [vmem:[%s0] sm:$0xff]
  %v15 = vld [vmem:[%s1] sm:$0xff]
  %v16 = vld [vmem:[%s1 + $0x8] sm:$0xff]
  %v17 = vld [vmem:[%s1 + $0x10] sm:$0xff]
  %v18 = vld [vmem:[%s1 + $0x18] sm:$0xff]
  %v19 = vld [vmem:[%s2] sm:$0x1]
  %v21 = vlaneseq
  %v22 = vshrl.u32 %v21, 7
  %v23 = vsub.s32 0, %v22
  %v24 = vrot.slane %v19, %v23
  %vm26 = vcmask 261120
  %v28 = vsel %vm26, %v14, 0
  %30 = vmatprep.subr.mxu0 0.0
  %31 = vmatpush1.msra.mxu0 0.0
  %32 = vmatprep.subr.mxu0 0.0
  %33 = vmatpush1.msra.mxu0 0.0
  %34 = vmatprep.subr.mxu0 0.0
  %35 = vmatpush1.msra.mxu0 0.0
  %36 = vmatprep.subr.mxu0 0.0
  %37 = vmatpush1.msra.mxu0 0.0
  %38 = vmatprep.subr.mxu0 0.0
  %39 = vmatpush1.msra.mxu0 0.0
  %40 = vmatprep.subr.mxu0 0.0
  %41 = vmatpush1.msra.mxu0 0.0
  %42 = vmatprep.subr.mxu0 0.0
  %43 = vmatpush1.msra.mxu0 0.0
  %44 = vmatprep.subr.mxu0 0.0
  %45 = vmatpush1.msra.mxu0 0.0
  %46 = vmatprep.subr.mxu0 0.0
  %47 = vmatpush1.msra.mxu0 0.0
  %48 = vmatprep.subr.mxu0 0.0
  %49 = vmatpush1.msra.mxu0 0.0
  %50 = vmatprep.subr.mxu0 0.0
  %51 = vmatpush1.msra.mxu0 0.0
  %52 = vmatprep.subr.mxu0 0.0
  %53 = vmatpush1.msra.mxu0 0.0
  %54 = vmatprep.subr.mxu0 0.0
  %55 = vmatpush1.msra.mxu0 %v18
  %56 = vmatprep.subr.mxu0 0.0
  %57 = vmatpush1.msra.mxu0 %v17
  %58 = vmatprep.subr.mxu0 0.0
  %59 = vmatpush1.msra.mxu0 %v16
  %60 = vmatprep.subr.mxu0 0.0
  %61 = vmatpush1.msra.mxu0 %v15
  %62 = vmatprep.subr.mxu0 0.0
  %63 = vmatpush2.msra.mxu0 0.0
  %64 = vmatprep.subr.mxu0 0.0
  %65 = vmatpush2.msra.mxu0 0.0
  %66 = vmatprep.subr.mxu0 0.0
  %67 = vmatpush2.msra.mxu0 0.0
  %68 = vmatprep.subr.mxu0 0.0
  %69 = vmatpush2.msra.mxu0 0.0
  %70 = vmatprep.subr.mxu0 0.0
  %71 = vmatpush2.msra.mxu0 0.0
  %72 = vmatprep.subr.mxu0 0.0
  %73 = vmatpush2.msra.mxu0 0.0
  %74 = vmatprep.subr.mxu0 0.0
  %75 = vmatpush2.msra.mxu0 0.0
  %76 = vmatprep.subr.mxu0 0.0
  %77 = vmatpush2.msra.mxu0 0.0
  %78 = vmatprep.subr.mxu0 0.0
  %79 = vmatpush2.msra.mxu0 0.0
  %80 = vmatprep.subr.mxu0 0.0
  %81 = vmatpush2.msra.mxu0 0.0
  %82 = vmatprep.subr.mxu0 0.0
  %83 = vmatpush2.msra.mxu0 0.0
  %84 = vmatprep.subr.mxu0 0.0
  %85 = vmatpush2.msra.mxu0 0.0
  %86 = vmatprep.subr.mxu0 0.0
  %87 = vmatpush2.msra.mxu0 0.0
  %88 = vmatprep.subr.mxu0 0.0
  %89 = vmatpush2.msra.mxu0 0.0
  %90 = vmatprep.subr.mxu0 0.0
  %91 = vmatpush2.msra.mxu0 0.0
  %92 = vmatprep.subr.mxu0 0.0
  %93 = vmatpush2.msra.mxu0 0.0
  %94 = vmatprep.mubr.f32.mxu0 0.0
  %95 = vmatmul.mubr.f32.gmra.mxu0 %v28
  %v96 = vpop.f32.mrf.mxu0
  %v97 = vadd.f32 %v24, %v96
  %v98 = vpop.f32.mrf.mxu0
  %99 = vdwg.mxu0
  %vm100 = vcmask 15360
  %101 = vst.msk [vmem:[%s3] sm:$0xff] %vm100, %v97
  // Predicated region
  $region14: #{tpu_custom_call.1} parent=0 // pred_check
    _
  $region15: #{tpu_custom_call.1} parent=0 // pred_check_branch
    %103 = sbr.rel (0) target = $region17
  $region16: #{tpu_custom_call.1} parent=0 // pred_region
    _
  $region17: #{tpu_custom_call.1} parent=0 // pred_fallthru
    _
  // Predicated region
  $region18: #{tpu_custom_call.1} parent=0 // pred_check
    _
  $region19: #{tpu_custom_call.1} parent=0 // pred_check_branch
    %105 = sbr.rel (0) target = $region21
  $region20: #{tpu_custom_call.1} parent=0 // pred_region
    _
  $region21: #{tpu_custom_call.1} parent=0 // pred_fallthru
    _

</llo_original>
